<compile_context>
chip_gen: v5e
topology: v5e:2x2
jax: 0.10.0
libtpu: 0.0.40
codegen_flags: <defaults>
</compile_context>

<pallas_src>
import functools

import jax
import jax.numpy as jnp
from jax.experimental import pallas as pl
from jax.experimental.pallas import tpu as pltpu


def _round_up(x: int, m: int) -> int:
    return ((x + m - 1) // m) * m


def _cdiv(a: int, b: int) -> int:
    return (a + b - 1) // b


# ----------------------------------------------------------------------------
# Kernel
# ----------------------------------------------------------------------------
def mlp_kernel(x_ref, w1_ref, b1_ref, w2_ref, b2_ref, o_ref):
    # fc1 on the MXU: cast the streamed x tile to bf16 *in-kernel* (saves the
    # wrapper-side pad/cast round trip through HBM). Accumulate in f32.
    xb = x_ref[...].astype(w1_ref.dtype)
    h = jnp.dot(xb, w1_ref[...], preferred_element_type=jnp.float32)
    # bias + ReLU epilogue in b1's dtype: bf16 on v6e/v7x (packed VALU),
    # f32 on v5e (no bf16 VPU).  Zero-padded hidden columns stay exactly 0.
    h = jnp.maximum(h.astype(b1_ref.dtype) + b1_ref[...], 0)
    # fc2: on the bf16-epilogue path this astype is a no-op.
    out = jnp.dot(h.astype(w2_ref.dtype), w2_ref[...],
                  preferred_element_type=jnp.float32)
    o_ref[...] = (out + b2_ref[...]).astype(o_ref.dtype)


# ----------------------------------------------------------------------------
# Per-generation tiling / VMEM policy
# ----------------------------------------------------------------------------
def _vmem_capacity_bytes() -> int:
    try:
        return int(pltpu.get_tpu_info().vmem_capacity_bytes)
    except Exception:
        return 64 * 1024 * 1024  # conservative (v7x per-TensorCore VMEM)


def _default_epilogue_dtype():
    """bf16 epilogue only on chips with a bf16 VPU (v6e/v7x); f32 otherwise."""
    try:
        kind = jax.devices()[0].device_kind.lower()
    except Exception:
        return jnp.float32
    if any(tag in kind for tag in ("v2", "v3", "v4", "v5")):
        return jnp.float32
    return jnp.bfloat16


def _derive_tiling(B, in_size, hid_p, out_p, *, x_itemsize, out_itemsize,
                   block_m):
    """Pick (tm, padded batch, vmem_limit) from the chip's VMEM capacity."""
    vmem_cap = _vmem_capacity_bytes()
    budget = (vmem_cap * 3) // 4  # ~96 MiB on 128 MiB parts, ~48 MiB on v7x

    # VMEM-resident operands; count 2x in case the compiler double-buffers
    # them (the Buffered(1) path halves this in practice).
    resident = 2 * ((in_size * hid_p + hid_p * out_p) * 2      # bf16 weights
                    + (hid_p + out_p) * 4)                     # biases

    # Streamed bytes per batch row: double-buffered x tile + out tile, plus
    # the f32 hidden/out activations that may spill to VMEM during compute.
    per_row = (2 * in_size * x_itemsize
               + 2 * out_p * out_itemsize
               + (hid_p + out_p) * 4)

    avail = max(budget - resident - (4 << 20), per_row * 8)
    max_tm = max(8, (avail // per_row) // 8 * 8)

    if block_m is None:
        desired = min(1024, max_tm)  # 512-1024 rows amortize per-step overhead
    else:
        desired = min(max(_round_up(block_m, 8), 8), max_tm)  # guard to 8x

    b_p8 = _round_up(max(B, 1), 8)
    tm = min(desired, b_p8)
    num_steps = _cdiv(b_p8, tm)
    # Give a 2-TensorCore part (v7x) >= 4 grid steps (>= 2 per core) once the
    # batch is large enough that >=256-row tiles remain.
    if num_steps < 4 and b_p8 >= 4 * 256:
        num_steps = 4
    # Re-balance tm instead of rounding the batch up to a full multiple of the
    # desired tile (worst-case padding is now < 8 * num_steps rows).
    tm = min(_round_up(_cdiv(b_p8, num_steps), 8), max_tm)
    num_steps = _cdiv(b_p8, tm)
    b_p = tm * num_steps

    vmem_limit = resident + tm * per_row + (4 << 20)
    vmem_limit = int(min(max(vmem_limit, 16 << 20), budget))
    return tm, b_p, vmem_limit


# ----------------------------------------------------------------------------
# Forward
# ----------------------------------------------------------------------------
@functools.partial(
    jax.jit,
    static_argnames=("tm", "b_p", "out_size", "vmem_limit",
                     "single_buffer_weights", "out_dtype"))
def _forward_impl(x, w1p, b1p, w2p, b2p, *, tm, b_p, out_size, vmem_limit,
                  single_buffer_weights, out_dtype):
    B, in_size = x.shape
    hid_p = w1p.shape[1]
    out_p = w2p.shape[1]

    # Only pad batch rows (to a multiple of 8 / tm-balanced); zero rows are
    # exact under matmul+ReLU and get sliced off below.
    xp = x if b_p == B else jnp.zeros((b_p, in_size), x.dtype).at[:B].set(x)

    grid = (b_p // tm,)

    def resident_spec(shape):
        # Constant index_map => fetched once and held VMEM-resident.
        if single_buffer_weights:
            return pl.BlockSpec(shape, lambda i: (0, 0),
                                pipeline_mode=pl.Buffered(1))
        return pl.BlockSpec(shape, lambda i: (0, 0))

    cost = pl.CostEstimate(
        flops=2 * b_p * (in_size * hid_p + hid_p * out_p),
        transcendentals=0,
        bytes_accessed=(xp.size * xp.dtype.itemsize
                        + w1p.size * 2 + w2p.size * 2
                        + b1p.size * b1p.dtype.itemsize + b2p.size * 4
                        + b_p * out_p * jnp.dtype(out_dtype).itemsize),
    )

    out_padded = pl.pallas_call(
        mlp_kernel,
        out_shape=jax.ShapeDtypeStruct((b_p, out_p), out_dtype),
        grid=grid,
        in_specs=[
            # x streamed unpadded on the feature dim (block minor dim == full
            # array dim is legal), original dtype; cast happens in-kernel.
            pl.BlockSpec((tm, in_size), lambda i: (i, 0)),
            resident_spec((in_size, hid_p)),   # W1 (bf16, VMEM-resident)
            resident_spec((1, hid_p)),         # b1
            resident_spec((hid_p, out_p)),     # W2 (bf16, VMEM-resident)
            resident_spec((1, out_p)),         # b2
        ],
        out_specs=pl.BlockSpec((tm, out_p), lambda i: (i, 0)),  # lane-dense
        compiler_params=pltpu.CompilerParams(
            dimension_semantics=("parallel",),   # shard batch across v7x TCs
            vmem_limit_bytes=vmem_limit,
        ),
        cost_estimate=cost,
    )(xp, w1p, b1p, w2p, b2p)

    return out_padded[:B, :out_size]
    # TODO(synk): when the resident weights exceed the VMEM budget (~20-25 MiB
    # on v7x), add a K-tiled path (trailing "arbitrary" grid axes over in /
    # hidden with an f32 VMEM accumulator) instead of keeping W1/W2 resident.


_WEIGHT_SINGLE_BUFFER_OK = True  # cached: does this build accept Buffered(1)?


def net1_forward(x, params, *, block_m=None, out_dtype=jnp.float32):
    """x: (B, in_size) f32; params: output of prepare_net1_params.

    Returns (B, out_size) in `out_dtype` (pass jnp.bfloat16 to halve the
    output write traffic if the consumer tolerates it)."""
    global _WEIGHT_SINGLE_BUFFER_OK
    w1p, b1p, w2p, b2p = params["w1"], params["b1"], params["w2"], params["b2"]
    B, in_size = x.shape
    assert in_size == w1p.shape[0], "x feature dim must match W1"
    hid_p, out_p = w1p.shape[1], w2p.shape[1]

    tm, b_p, vmem_limit = _derive_tiling(
        B, in_size, hid_p, out_p,
        x_itemsize=jnp.dtype(x.dtype).itemsize,
        out_itemsize=jnp.dtype(out_dtype).itemsize,
        block_m=block_m)

    kwargs = dict(tm=tm, b_p=b_p, out_size=params["out_size"],
                  vmem_limit=vmem_limit, out_dtype=out_dtype)

    if _WEIGHT_SINGLE_BUFFER_OK:
        try:
            return _forward_impl(x, w1p, b1p, w2p, b2p,
                                 single_buffer_weights=True, **kwargs)
        except Exception:
            # Fall back (and remember) if this Pallas build rejects
            # pipeline_mode=pl.Buffered(1) on pallas_call BlockSpecs.
            _WEIGHT_SINGLE_BUFFER_OK = False
    return _forward_impl(x, w1p, b1p, w2p, b2p,
                         single_buffer_weights=False, **kwargs)


# ----------------------------------------------------------------------------
# One-time parameter preparation (hoisted out of the per-call path)
# ----------------------------------------------------------------------------
def prepare_net1_params(w1, b1, w2, b2, *, epilogue_dtype=None):
    """Pad/cast Net1 weights ONCE at init time.

    Weights are kept pre-transposed as (in_features, out_features) so the
    kernel computes x @ W + b (== PyTorch x @ W.T + b with W (out, in)).
    Only the *output* feature dims are zero-padded to multiples of 128; the
    contraction dims stay unpadded because full-dim blocks are legal.
    NOTE: matmul inputs are bf16 (f32 accumulation) => ~1e-2-level deviation
    from an f32-exact nn.Linear reference."""
    if epilogue_dtype is None:
        epilogue_dtype = _default_epilogue_dtype()
    in_size, hidden = w1.shape
    out_size = w2.shape[1]
    hid_p = _round_up(hidden, 128)
    out_p = _round_up(out_size, 128)

    w1p = jnp.zeros((in_size, hid_p), jnp.bfloat16).at[:, :hidden].set(
        w1.astype(jnp.bfloat16))
    b1p = jnp.zeros((1, hid_p), epilogue_dtype).at[:, :hidden].set(
        jnp.reshape(b1, (1, hidden)).astype(epilogue_dtype))
    w2p = jnp.zeros((hid_p, out_p), jnp.bfloat16).at[:hidden, :out_size].set(
        w2.astype(jnp.bfloat16))
    b2p = jnp.zeros((1, out_p), jnp.float32).at[:, :out_size].set(
        jnp.reshape(b2, (1, out_size)).astype(jnp.float32))

    return {"w1": w1p, "b1": b1p, "w2": w2p, "b2": b2p,
            "in_size": in_size, "hidden": hidden, "out_size": out_size}


def init_linear_params(key, in_features, out_features, dtype=jnp.float32):
    """Deterministic init mimicking torch.nn.Linear (uniform ±1/sqrt(fan_in)).
    Weight returned pre-transposed as (in_features, out_features)."""
    kw, kb = jax.random.split(key)
    bound = 1.0 / jnp.sqrt(jnp.float32(in_features))
    w = jax.random.uniform(kw, (in_features, out_features), dtype, -bound, bound)
    b = jax.random.uniform(kb, (1, out_features), dtype, -bound, bound)
    return w, b


if __name__ == "__main__":
    # Small shapes consistent with Net1(in_size, hidden_size, out_size).
    batch, in_size, hidden_size, out_size = 8, 32, 64, 16

    key = jax.random.PRNGKey(0)
    kx, k1, k2 = jax.random.split(key, 3)

    x = jax.random.normal(kx, (batch, in_size), jnp.float32)
    w1, b1 = init_linear_params(k1, in_size, hidden_size)
    w2, b2 = init_linear_params(k2, hidden_size, out_size)

    params = prepare_net1_params(w1, b1, w2, b2)   # once, outside the hot path
    out = net1_forward(x, params)
    out = jax.block_until_ready(out)

    # Pure-JAX f32 reference; tolerance loosened for bf16 MXU inputs.
    ref = jnp.maximum(x @ w1 + b1, 0.0) @ w2 + b2
    assert out.shape == (batch, out_size)
    assert jnp.allclose(out, ref, atol=2e-2, rtol=2e-2), (
        float(jnp.max(jnp.abs(out - ref))))

    print("KERNEL_OK")
</pallas_src>

<mosaic_0001>
module attributes {stable_mosaic.version = 11 : i64} {
  func.func @mlp_kernel(%arg0: i32, %arg1: memref<8x32xf32, #tpu.memory_space<vmem>>, %arg2: memref<32x128xbf16, #tpu.memory_space<vmem>>, %arg3: memref<1x128xbf16, #tpu.memory_space<vmem>>, %arg4: memref<128x128xbf16, #tpu.memory_space<vmem>>, %arg5: memref<1x128xf32, #tpu.memory_space<vmem>>, %arg6: memref<8x128xf32, #tpu.memory_space<vmem>>) attributes {dimension_semantics = [#tpu.dimension_semantics<parallel>], iteration_bounds = array<i64: 1>, scalar_prefetch = 0 : i64, scratch_operands = 0 : i64, tpu.core_type = #tpu.core_type<tc>, window_params = [{transform_indices = @transform_0, window_bounds = array<i64: 8, 32>}, {pipeline_mode = #tpu.pipeline_mode<synchronous>, transform_indices = @transform_1, window_bounds = array<i64: 32, 128>}, {pipeline_mode = #tpu.pipeline_mode<synchronous>, transform_indices = @transform_2, window_bounds = array<i64: 1, 128>}, {pipeline_mode = #tpu.pipeline_mode<synchronous>, transform_indices = @transform_3, window_bounds = array<i64: 128, 128>}, {pipeline_mode = #tpu.pipeline_mode<synchronous>, transform_indices = @transform_4, window_bounds = array<i64: 1, 128>}, {transform_indices = @transform_5, window_bounds = array<i64: 8, 128>}]} {
    %c0 = arith.constant 0 : index
    %c0_0 = arith.constant 0 : index
    %0 = vector.load %arg1[%c0, %c0_0] : memref<8x32xf32, #tpu.memory_space<vmem>>, vector<8x32xf32>
    %1 = arith.truncf %0 : vector<8x32xf32> to vector<8x32xbf16>
    %c0_1 = arith.constant 0 : index
    %c0_2 = arith.constant 0 : index
    %2 = vector.load %arg2[%c0_1, %c0_2] : memref<32x128xbf16, #tpu.memory_space<vmem>>, vector<32x128xbf16>
    %cst = arith.constant dense<0.000000e+00> : vector<8x128xf32>
    %3 = tpu.matmul %1, %2, %cst {dimension_numbers = #tpu.dot_dimension_numbers<[1], [0], [0], [1], [0, 0, 1, 1], [], []>} : vector<8x32xbf16>, vector<32x128xbf16>, vector<8x128xf32> -> vector<8x128xf32>
    %4 = arith.truncf %3 : vector<8x128xf32> to vector<8x128xbf16>
    %c0_3 = arith.constant 0 : index
    %c0_4 = arith.constant 0 : index
    %5 = vector.load %arg3[%c0_3, %c0_4] : memref<1x128xbf16, #tpu.memory_space<vmem>>, vector<1x128xbf16>
    %6 = vector.broadcast %5 : vector<1x128xbf16> to vector<8x128xbf16>
    %7 = arith.addf %4, %6 : vector<8x128xbf16>
    %cst_5 = arith.constant 0.000000e+00 : bf16
    %8 = vector.broadcast %cst_5 : bf16 to vector<8x128xbf16>
    %9 = arith.maximumf %7, %8 : vector<8x128xbf16>
    %c0_6 = arith.constant 0 : index
    %c0_7 = arith.constant 0 : index
    %10 = vector.load %arg4[%c0_6, %c0_7] : memref<128x128xbf16, #tpu.memory_space<vmem>>, vector<128x128xbf16>
    %cst_8 = arith.constant dense<0.000000e+00> : vector<8x128xf32>
    %11 = tpu.matmul %9, %10, %cst_8 {dimension_numbers = #tpu.dot_dimension_numbers<[1], [0], [0], [1], [0, 0, 1, 1], [], []>} : vector<8x128xbf16>, vector<128x128xbf16>, vector<8x128xf32> -> vector<8x128xf32>
    %c0_9 = arith.constant 0 : index
    %c0_10 = arith.constant 0 : index
    %12 = vector.load %arg5[%c0_9, %c0_10] : memref<1x128xf32, #tpu.memory_space<vmem>>, vector<1x128xf32>
    %13 = vector.broadcast %12 : vector<1x128xf32> to vector<8x128xf32>
    %14 = arith.addf %11, %13 : vector<8x128xf32>
    %c0_11 = arith.constant 0 : index
    %c0_12 = arith.constant 0 : index
    %15 = vector.load %arg6[%c0_11, %c0_12] : memref<8x128xf32, #tpu.memory_space<vmem>>, vector<8x128xf32>
    tpu.vector_store %arg6[%c0_11, %c0_12], %14 {strides = array<i32>} : memref<8x128xf32, #tpu.memory_space<vmem>>, vector<8x128xf32>,
    return
  }
  func.func @transform_0(%arg0: i32) -> (i32, i32) {
    %c0_i32 = arith.constant 0 : i32
    %c0_i32_0 = arith.constant 0 : i32
    return %arg0, %c0_i32 : i32, i32
  }
  func.func @transform_1(%arg0: i32) -> (i32, i32) {
    %c0_i32 = arith.constant 0 : i32
    %c0_i32_0 = arith.constant 0 : i32
    %c0_i32_1 = arith.constant 0 : i32
    return %c0_i32, %c0_i32_0 : i32, i32
  }
  func.func @transform_2(%arg0: i32) -> (i32, i32) {
    %c0_i32 = arith.constant 0 : i32
    %c0_i32_0 = arith.constant 0 : i32
    %c0_i32_1 = arith.constant 0 : i32
    return %c0_i32, %c0_i32_0 : i32, i32
  }
  func.func @transform_3(%arg0: i32) -> (i32, i32) {
    %c0_i32 = arith.constant 0 : i32
    %c0_i32_0 = arith.constant 0 : i32
    %c0_i32_1 = arith.constant 0 : i32
    return %c0_i32, %c0_i32_0 : i32, i32
  }
  func.func @transform_4(%arg0: i32) -> (i32, i32) {
    %c0_i32 = arith.constant 0 : i32
    %c0_i32_0 = arith.constant 0 : i32
    %c0_i32_1 = arith.constant 0 : i32
    return %c0_i32, %c0_i32_0 : i32, i32
  }
  func.func @transform_5(%arg0: i32) -> (i32, i32) {
    %c0_i32 = arith.constant 0 : i32
    %c0_i32_0 = arith.constant 0 : i32
    return %arg0, %c0_i32 : i32, i32
  }
}

module attributes {stable_mosaic.version = 11 : i64} {
  func.func @mlp_kernel(%arg0: i32, %arg1: memref<8x32xf32, #tpu.memory_space<vmem>>, %arg2: memref<32x128xbf16, #tpu.memory_space<vmem>>, %arg3: memref<1x128xbf16, #tpu.memory_space<vmem>>, %arg4: memref<128x128xbf16, #tpu.memory_space<vmem>>, %arg5: memref<1x128xf32, #tpu.memory_space<vmem>>, %arg6: memref<8x128xf32, #tpu.memory_space<vmem>>) attributes {dimension_semantics = [#tpu.dimension_semantics<parallel>], iteration_bounds = array<i64: 1>, scalar_prefetch = 0 : i64, scratch_operands = 0 : i64, tpu.core_type = #tpu.core_type<tc>, window_params = [{transform_indices = @transform_0, window_bounds = array<i64: 8, 32>}, {pipeline_mode = #tpu.pipeline_mode<synchronous>, transform_indices = @transform_1, window_bounds = array<i64: 32, 128>}, {pipeline_mode = #tpu.pipeline_mode<synchronous>, transform_indices = @transform_2, window_bounds = array<i64: 1, 128>}, {pipeline_mode = #tpu.pipeline_mode<synchronous>, transform_indices = @transform_3, window_bounds = array<i64: 128, 128>}, {pipeline_mode = #tpu.pipeline_mode<synchronous>, transform_indices = @transform_4, window_bounds = array<i64: 1, 128>}, {transform_indices = @transform_5, window_bounds = array<i64: 8, 128>}]} {
    %c0 = arith.constant 0 : index
    %c0_0 = arith.constant 0 : index
    %0 = vector.load %arg1[%c0, %c0_0] : memref<8x32xf32, #tpu.memory_space<vmem>>, vector<8x32xf32>
    %1 = arith.truncf %0 : vector<8x32xf32> to vector<8x32xbf16>
    %c0_1 = arith.constant 0 : index
    %c0_2 = arith.constant 0 : index
    %2 = vector.load %arg2[%c0_1, %c0_2] : memref<32x128xbf16, #tpu.memory_space<vmem>>, vector<32x128xbf16>
    %cst = arith.constant dense<0.000000e+00> : vector<8x128xf32>
    %3 = tpu.matmul %1, %2, %cst {dimension_numbers = #tpu.dot_dimension_numbers<[1], [0], [0], [1], [0, 0, 1, 1], [], []>} : vector<8x32xbf16>, vector<32x128xbf16>, vector<8x128xf32> -> vector<8x128xf32>
    %4 = arith.truncf %3 : vector<8x128xf32> to vector<8x128xbf16>
    %c0_3 = arith.constant 0 : index
    %c0_4 = arith.constant 0 : index
    %5 = vector.load %arg3[%c0_3, %c0_4] : memref<1x128xbf16, #tpu.memory_space<vmem>>, vector<1x128xbf16>
    %6 = vector.broadcast %5 : vector<1x128xbf16> to vector<8x128xbf16>
    %7 = arith.addf %4, %6 : vector<8x128xbf16>
    %cst_5 = arith.constant 0.000000e+00 : bf16
    %8 = vector.broadcast %cst_5 : bf16 to vector<8x128xbf16>
    %9 = arith.maximumf %7, %8 : vector<8x128xbf16>
    %c0_6 = arith.constant 0 : index
    %c0_7 = arith.constant 0 : index
    %10 = vector.load %arg4[%c0_6, %c0_7] : memref<128x128xbf16, #tpu.memory_space<vmem>>, vector<128x128xbf16>
    %cst_8 = arith.constant dense<0.000000e+00> : vector<8x128xf32>
    %11 = tpu.matmul %9, %10, %cst_8 {dimension_numbers = #tpu.dot_dimension_numbers<[1], [0], [0], [1], [0, 0, 1, 1], [], []>} : vector<8x128xbf16>, vector<128x128xbf16>, vector<8x128xf32> -> vector<8x128xf32>
    %c0_9 = arith.constant 0 : index
    %c0_10 = arith.constant 0 : index
    %12 = vector.load %arg5[%c0_9, %c0_10] : memref<1x128xf32, #tpu.memory_space<vmem>>, vector<1x128xf32>
    %13 = vector.broadcast %12 : vector<1x128xf32> to vector<8x128xf32>
    %14 = arith.addf %11, %13 : vector<8x128xf32>
    %c0_11 = arith.constant 0 : index
    %c0_12 = arith.constant 0 : index
    %15 = vector.load %arg6[%c0_11, %c0_12] : memref<8x128xf32, #tpu.memory_space<vmem>>, vector<8x128xf32>
    tpu.vector_store %arg6[%c0_11, %c0_12], %14 {strides = array<i32>} : memref<8x128xf32, #tpu.memory_space<vmem>>, vector<8x128xf32>,
    return
  }
  func.func @transform_0(%arg0: i32) -> (i32, i32) {
    %c0_i32 = arith.constant 0 : i32
    %c0_i32_0 = arith.constant 0 : i32
    return %arg0, %c0_i32 : i32, i32
  }
  func.func @transform_1(%arg0: i32) -> (i32, i32) {
    %c0_i32 = arith.constant 0 : i32
    %c0_i32_0 = arith.constant 0 : i32
    %c0_i32_1 = arith.constant 0 : i32
    return %c0_i32, %c0_i32_0 : i32, i32
  }
  func.func @transform_2(%arg0: i32) -> (i32, i32) {
    %c0_i32 = arith.constant 0 : i32
    %c0_i32_0 = arith.constant 0 : i32
    %c0_i32_1 = arith.constant 0 : i32
    return %c0_i32, %c0_i32_0 : i32, i32
  }
  func.func @transform_3(%arg0: i32) -> (i32, i32) {
    %c0_i32 = arith.constant 0 : i32
    %c0_i32_0 = arith.constant 0 : i32
    %c0_i32_1 = arith.constant 0 : i32
    return %c0_i32, %c0_i32_0 : i32, i32
  }
  func.func @transform_4(%arg0: i32) -> (i32, i32) {
    %c0_i32 = arith.constant 0 : i32
    %c0_i32_0 = arith.constant 0 : i32
    %c0_i32_1 = arith.constant 0 : i32
    return %c0_i32, %c0_i32_0 : i32, i32
  }
  func.func @transform_5(%arg0: i32) -> (i32, i32) {
    %c0_i32 = arith.constant 0 : i32
    %c0_i32_0 = arith.constant 0 : i32
    return %arg0, %c0_i32 : i32, i32
  }
}

</mosaic_0001>

<llo_original>
// kernel: _forward_impl.1
$region0: #{_forward_impl.1}
  #allocation0 [shape = 'u32[]', space=smem, size = 0x4, offset = 0x4, fixed_abs, tag = 'smem constant byte address 0x4 - core index']
  #allocation1 [shape = 'u32[72,128]{1,0:T(1,128)}', space=vmem, size = 0x9000, scoped, tag = 'internal scratch']
  %s0 = inlined_call_operand.hbm [shape: f32[8,32], index: 0, kind: input, shape index: {}]
  %s1 = inlined_call_operand.hbm [shape: bf16[32,128], index: 1, kind: input, shape index: {}]
  %s2 = inlined_call_operand.vmem [shape: bf16[1,128], index: 2, kind: input, shape index: {}]
  %s3 = inlined_call_operand.hbm [shape: bf16[128,128], index: 3, kind: input, shape index: {}]
  %s4 = inlined_call_operand.vmem [shape: f32[1,128], index: 4, kind: input, shape index: {}]
  %s5 = inlined_call_operand.hbm [shape: f32[8,128], index: 5, kind: output, shape index: {}]
  %s6 = sld [smem:[#allocation0]]
  $region42: #{_forward_impl.1} parent=0
    _
  %s8 = ssub.s32 1, %s6
  %s9 = scalar_select 0, %s8, %s6
  $region1: #{_forward_impl.1} parent=0
    #allocation2 [shape = 'u8[4096]{0}', space=vmem, size = 0x1000, scoped, tag = 'input window, operand 0, single buffered']
    #allocation3 [shape = 's32[1]{0}', space=sflag, size = 0x4, scoped, tag = 'scoped memory for _forward_impl.1']
    #allocation4 [shape = 's32[1]{0}', space=sflag, size = 0x4, scoped, tag = 'scoped memory for _forward_impl.1']
    #allocation5 [shape = 'u8[8192]{0}', space=vmem, size = 0x2000, scoped, tag = 'input window, operand 1, single buffered']
    #allocation6 [shape = 's32[1]{0}', space=sflag, size = 0x4, scoped, tag = 'scoped memory for _forward_impl.1']
    #allocation7 [shape = 'u8[32768]{0}', space=vmem, size = 0x8000, scoped, tag = 'input window, operand 3, single buffered']
    #allocation8 [shape = 'u8[4096]{0}', space=vmem, size = 0x1000, scoped, tag = 'output window, operand 0, single buffered']
    %10 = vsyncpa [#allocation3], 0
    %11 = vsyncpa [#allocation6], 0
    %12 = vsyncpa [#allocation4], 0
    // Predicated region
    $region2: #{_forward_impl.1} parent=1 // pred_check
      _
    $region3: #{_forward_impl.1} parent=1 // pred_check_branch
      %14 = sbr.rel (0) target = $region5
    $region4: #{_forward_impl.1} parent=1 // pred_region
      %16 = vsyncadd [#allocation3], 0
      %s18 = sshll.u32 %s0, 4
      %s19 = int_to_ptr.hbm [resolvable:$true] %s18
      %s20 = sshll.u32 [#allocation2], 4
      %s21 = int_to_ptr.vmem [resolvable:$true] %s20
      %23 = dma.hbm_to_vmem [thread:$0]  %s19, 128, %s21, [#allocation3]
    $region5: #{_forward_impl.1} parent=1 // pred_fallthru
      _
    // Predicated region
    $region6: #{_forward_impl.1} parent=1 // pred_check
      _
    $region7: #{_forward_impl.1} parent=1 // pred_check_branch
      %25 = sbr.rel (0) target = $region9
    $region8: #{_forward_impl.1} parent=1 // pred_region
      %27 = vsyncadd [#allocation6], 0
      %s28 = sshll.u32 %s1, 4
      %s29 = int_to_ptr.hbm [resolvable:$true] %s28
      %s30 = sshll.u32 [#allocation5], 4
      %s31 = int_to_ptr.vmem [resolvable:$true] %s30
      %36 = dma.hbm_to_vmem [thread:$0]  %s29, 256, %s31, [#allocation6], 64, 64, 4
    $region9: #{_forward_impl.1} parent=1 // pred_fallthru
      _
    // Predicated region
    $region10: #{_forward_impl.1} parent=1 // pred_check
      _
    $region11: #{_forward_impl.1} parent=1 // pred_check_branch
      %38 = sbr.rel (0) target = $region13
    $region12: #{_forward_impl.1} parent=1 // pred_region
      _
    $region13: #{_forward_impl.1} parent=1 // pred_fallthru
      _
    // Predicated region
    $region14: #{_forward_impl.1} parent=1 // pred_check
      _
    $region15: #{_forward_impl.1} parent=1 // pred_check_branch
      %40 = sbr.rel (0) target = $region17
    $region16: #{_forward_impl.1} parent=1 // pred_region
      %42 = vsyncadd [#allocation6], 0
      %s43 = sshll.u32 %s3, 4
      %s44 = int_to_ptr.hbm [resolvable:$true] %s43
      %s45 = sshll.u32 [#allocation7], 4
      %s46 = int_to_ptr.vmem [resolvable:$true] %s45
      %51 = dma.hbm_to_vmem [thread:$0]  %s44, 1024, %s46, [#allocation6], 64, 64, 4
    $region17: #{_forward_impl.1} parent=1 // pred_fallthru
      _
    // Predicated region
    $region18: #{_forward_impl.1} parent=1 // pred_check
      _
    $region19: #{_forward_impl.1} parent=1 // pred_check_branch
      %53 = sbr.rel (0) target = $region21
    $region20: #{_forward_impl.1} parent=1 // pred_region
      _
    $region21: #{_forward_impl.1} parent=1 // pred_fallthru
      _
    // Predicated region
    $region22: #{_forward_impl.1} parent=1 // pred_check
      _
    $region23: #{_forward_impl.1} parent=1 // pred_check_branch
      %55 = sbr.rel (0) target = $region25
    $region24: #{_forward_impl.1} parent=1 // pred_region
      %57 = dma.done [#allocation3], 128
    $region25: #{_forward_impl.1} parent=1 // pred_fallthru
      _
    // Predicated region
    $region26: #{_forward_impl.1} parent=1 // pred_check
      _
    $region27: #{_forward_impl.1} parent=1 // pred_check_branch
      %59 = sbr.rel (0) target = $region29
    $region28: #{_forward_impl.1} parent=1 // pred_region
      %61 = dma.done [#allocation6], 256
    $region29: #{_forward_impl.1} parent=1 // pred_fallthru
      _
    // Predicated region
    $region30: #{_forward_impl.1} parent=1 // pred_check
      _
    $region31: #{_forward_impl.1} parent=1 // pred_check_branch
      %63 = sbr.rel (0) target = $region33
    $region32: #{_forward_impl.1} parent=1 // pred_region
      %65 = dma.done [#allocation6], 1024
    $region33: #{_forward_impl.1} parent=1 // pred_fallthru
      _
    %v67 = vld [vmem:[#allocation2] sm:$0xff]
    %v68 = vpack.c.bf16 %v67, %v67
    %v69 = vld [vmem:[#allocation5] sm:$0xf]
    %v70 = vld [vmem:[#allocation5 + $0x4] sm:$0xf]
    %v71 = vld [vmem:[#allocation5 + $0x8] sm:$0xf]
    %v72 = vld [vmem:[#allocation5 + $0xc] sm:$0xf]
    %v77 = vunpack.c.l.b16 %v69
    %v78 = vunpack.c.l.b16 %v70
    %v79 = vunpack.c.l.b16 %v71
    %v80 = vunpack.c.l.b16 %v72
    %v81 = vpack.c.b16 %v78, %v77
    %v82 = vpack.c.b16 %v80, %v79
    %vm85 = vcmask 261120
    %v87 = vsel %vm85, %v68, 0
    %89 = vmatpush.bf16.msra.mxu0 0
    %90 = vmatpush.bf16.msra.mxu0 0
    %91 = vmatpush.bf16.msra.mxu0 0
    %92 = vmatpush.bf16.msra.mxu0 0
    %93 = vmatpush.bf16.msra.mxu0 0
    %94 = vmatpush.bf16.msra.mxu0 0
    %95 = vmatpush.bf16.msra.mxu0 %v82
    %96 = vmatpush.bf16.msra.mxu0 %v81
    %97 = vmatmul.bf16.gmra.mxu0 %v87
    %v98 = vpop.f32.mrf.mxu0
    %v99 = vadd.f32 0.0, %v98
    %v100 = vpop.f32.mrf.mxu0
    %101 = vdwg.mxu0
    %v102 = vpack.c.bf16 %v99, %v99
    %v103 = vld [vmem:[%s2] sm:$0x1]
    %v105 = vpack.i.b16 %v103, %v103
    %v107 = vperm.slane %v105, 0
    %v108 = vunpack.c.l.bf16 %v102
    %v109 = vunpack.c.l.bf16 %v107
    %v110 = vadd.f32 %v108, %v109
    %v111 = vpack.c.bf16 %v110, %v110
    %v112 = vunpack.c.l.bf16 %v111
    %v113 = vmax.f32 %v112, 0.0
    %v114 = vpack.c.bf16 %v113, %v113
    %v115 = vld [vmem:[#allocation7] sm:$0xf]
    %v116 = vld [vmem:[#allocation7 + $0x4] sm:$0xf]
    %v117 = vld [vmem:[#allocation7 + $0x8] sm:$0xf]
    %v118 = vld [vmem:[#allocation7 + $0xc] sm:$0xf]
    %v119 = vld [vmem:[#allocation7 + $0x10] sm:$0xf]
    %v120 = vld [vmem:[#allocation7 + $0x14] sm:$0xf]
    %v121 = vld [vmem:[#allocation7 + $0x18] sm:$0xf]
    %v122 = vld [vmem:[#allocation7 + $0x1c] sm:$0xf]
    %v123 = vld [vmem:[#allocation7 + $0x20] sm:$0xf]
    %v124 = vld [vmem:[#allocation7 + $0x24] sm:$0xf]
    %v125 = vld [vmem:[#allocation7 + $0x28] sm:$0xf]
    %v126 = vld [vmem:[#allocation7 + $0x2c] sm:$0xf]
    %v127 = vld [vmem:[#allocation7 + $0x30] sm:$0xf]
    %v128 = vld [vmem:[#allocation7 + $0x34] sm:$0xf]
    %v129 = vld [vmem:[#allocation7 + $0x38] sm:$0xf]
    %v130 = vld [vmem:[#allocation7 + $0x3c] sm:$0xf]
    %v131 = vld [vmem:[%s4] sm:$0x1]
    %v133 = vperm.slane %v131, 0
    %v151 = vunpack.c.l.b16 %v115
    %v152 = vunpack.c.l.b16 %v116
    %v153 = vunpack.c.l.b16 %v117
    %v154 = vunpack.c.l.b16 %v118
    %v155 = vunpack.c.l.b16 %v119
    %v156 = vunpack.c.l.b16 %v120
    %v157 = vunpack.c.l.b16 %v121
    %v158 = vunpack.c.l.b16 %v122
    %v159 = vunpack.c.l.b16 %v123
    %v160 = vunpack.c.l.b16 %v124
    %v161 = vunpack.c.l.b16 %v125
    %v162 = vunpack.c.l.b16 %v126
    %v163 = vunpack.c.l.b16 %v127
    %v164 = vunpack.c.l.b16 %v128
    %v165 = vunpack.c.l.b16 %v129
    %v166 = vunpack.c.l.b16 %v130
    %v167 = vpack.c.b16 %v152, %v151
    %v168 = vpack.c.b16 %v154, %v153
    %v169 = vpack.c.b16 %v156, %v155
    %v170 = vpack.c.b16 %v158, %v157
    %v171 = vpack.c.b16 %v160, %v159
    %v172 = vpack.c.b16 %v162, %v161
    %v173 = vpack.c.b16 %v164, %v163
    %v174 = vpack.c.b16 %v166, %v165
    %183 = vmatpush.bf16.msra.mxu0 %v174
    %184 = vmatpush.bf16.msra.mxu0 %v173
    %185 = vmatpush.bf16.msra.mxu0 %v172
    %186 = vmatpush.bf16.msra.mxu0 %v171
    %187 = vmatpush.bf16.msra.mxu0 %v170
    %188 = vmatpush.bf16.msra.mxu0 %v169
    %189 = vmatpush.bf16.msra.mxu0 %v168
    %190 = vmatpush.bf16.msra.mxu0 %v167
    %191 = vmatmul.bf16.gmra.mxu0 %v114
    %v192 = vpop.f32.mrf.mxu0
    %v193 = vadd.f32 %v133, %v192
    %v194 = vpop.f32.mrf.mxu0
    %195 = vdwg.mxu0
    %196 = vst [vmem:[#allocation8] sm:$0xff] %v193
    // Predicated region
    $region34: #{_forward_impl.1} parent=1 // pred_check
      _
    $region35: #{_forward_impl.1} parent=1 // pred_check_branch
      %198 = sbr.rel (0) target = $region37
    $region36: #{_forward_impl.1} parent=1 // pred_region
      %200 = vsyncadd [#allocation4], 0
      %s202 = sshll.u32 [#allocation8], 4
      %s203 = int_to_ptr.vmem [resolvable:$true] %s202
      %s204 = sshll.u32 %s5, 4
      %s205 = int_to_ptr.hbm [resolvable:$true] %s204
      %207 = dma.vmem_to_hbm [thread:$0]  %s203, 128, %s205, [#allocation4]
    $region37: #{_forward_impl.1} parent=1 // pred_fallthru
      _
    // Predicated region
    $region38: #{_forward_impl.1} parent=1 // pred_check
      _
    $region39: #{_forward_impl.1} parent=1 // pred_check_branch
      %209 = sbr.rel (0) target = $region41
    $region40: #{_forward_impl.1} parent=1 // pred_region
      %211 = dma.done [#allocation4], 128
    $region41: #{_forward_impl.1} parent=1 // pred_fallthru
      _
    %212 = vsyncpa [#allocation3], 1
    %213 = vsyncpa [#allocation6], 1
    %214 = vsyncpa [#allocation4], 1

// kernel: _forward_impl.1
$region0: #{_forward_impl.1}
  #allocation0 [shape = 'u32[]', space=smem, size = 0x4, offset = 0x4, fixed_abs, tag = 'smem constant byte address 0x4 - core index']
  #allocation1 [shape = 'u32[72,128]{1,0:T(1,128)}', space=vmem, size = 0x9000, scoped, tag = 'internal scratch']
  %s0 = inlined_call_operand.hbm [shape: f32[8,32], index: 0, kind: input, shape index: {}]
  %s1 = inlined_call_operand.hbm [shape: bf16[32,128], index: 1, kind: input, shape index: {}]
  %s2 = inlined_call_operand.vmem [shape: bf16[1,128], index: 2, kind: input, shape index: {}]
  %s3 = inlined_call_operand.hbm [shape: bf16[128,128], index: 3, kind: input, shape index: {}]
  %s4 = inlined_call_operand.vmem [shape: f32[1,128], index: 4, kind: input, shape index: {}]
  %s5 = inlined_call_operand.hbm [shape: f32[8,128], index: 5, kind: output, shape index: {}]
  %s6 = sld [smem:[#allocation0]]
  $region42: #{_forward_impl.1} parent=0
    _
  %s8 = ssub.s32 1, %s6
  %s9 = scalar_select 0, %s8, %s6
  $region1: #{_forward_impl.1} parent=0
    #allocation2 [shape = 'u8[4096]{0}', space=vmem, size = 0x1000, scoped, tag = 'input window, operand 0, single buffered']
    #allocation3 [shape = 's32[1]{0}', space=sflag, size = 0x4, scoped, tag = 'scoped memory for _forward_impl.1']
    #allocation4 [shape = 's32[1]{0}', space=sflag, size = 0x4, scoped, tag = 'scoped memory for _forward_impl.1']
    #allocation5 [shape = 'u8[8192]{0}', space=vmem, size = 0x2000, scoped, tag = 'input window, operand 1, single buffered']
    #allocation6 [shape = 's32[1]{0}', space=sflag, size = 0x4, scoped, tag = 'scoped memory for _forward_impl.1']
    #allocation7 [shape = 'u8[32768]{0}', space=vmem, size = 0x8000, scoped, tag = 'input window, operand 3, single buffered']
    #allocation8 [shape = 'u8[4096]{0}', space=vmem, size = 0x1000, scoped, tag = 'output window, operand 0, single buffered']
    %10 = vsyncpa [#allocation3], 0
    %11 = vsyncpa [#allocation6], 0
    %12 = vsyncpa [#allocation4], 0
    // Predicated region
    $region2: #{_forward_impl.1} parent=1 // pred_check
      _
    $region3: #{_forward_impl.1} parent=1 // pred_check_branch
      %14 = sbr.rel (0) target = $region5
    $region4: #{_forward_impl.1} parent=1 // pred_region
      %16 = vsyncadd [#allocation3], 0
      %s18 = sshll.u32 %s0, 4
      %s19 = int_to_ptr.hbm [resolvable:$true] %s18
      %s20 = sshll.u32 [#allocation2], 4
      %s21 = int_to_ptr.vmem [resolvable:$true] %s20
      %23 = dma.hbm_to_vmem [thread:$0]  %s19, 128, %s21, [#allocation3]
    $region5: #{_forward_impl.1} parent=1 // pred_fallthru
      _
    // Predicated region
    $region6: #{_forward_impl.1} parent=1 // pred_check
      _
    $region7: #{_forward_impl.1} parent=1 // pred_check_branch
      %25 = sbr.rel (0) target = $region9
    $region8: #{_forward_impl.1} parent=1 // pred_region
      %27 = vsyncadd [#allocation6], 0
      %s28 = sshll.u32 %s1, 4
      %s29 = int_to_ptr.hbm [resolvable:$true] %s28
      %s30 = sshll.u32 [#allocation5], 4
      %s31 = int_to_ptr.vmem [resolvable:$true] %s30
      %36 = dma.hbm_to_vmem [thread:$0]  %s29, 256, %s31, [#allocation6], 64, 64, 4
    $region9: #{_forward_impl.1} parent=1 // pred_fallthru
      _
    // Predicated region
    $region10: #{_forward_impl.1} parent=1 // pred_check
      _
    $region11: #{_forward_impl.1} parent=1 // pred_check_branch
      %38 = sbr.rel (0) target = $region13
    $region12: #{_forward_impl.1} parent=1 // pred_region
      _
    $region13: #{_forward_impl.1} parent=1 // pred_fallthru
      _
    // Predicated region
    $region14: #{_forward_impl.1} parent=1 // pred_check
      _
    $region15: #{_forward_impl.1} parent=1 // pred_check_branch
      %40 = sbr.rel (0) target = $region17
    $region16: #{_forward_impl.1} parent=1 // pred_region
      %42 = vsyncadd [#allocation6], 0
      %s43 = sshll.u32 %s3, 4
      %s44 = int_to_ptr.hbm [resolvable:$true] %s43
      %s45 = sshll.u32 [#allocation7], 4
      %s46 = int_to_ptr.vmem [resolvable:$true] %s45
      %51 = dma.hbm_to_vmem [thread:$0]  %s44, 1024, %s46, [#allocation6], 64, 64, 4
    $region17: #{_forward_impl.1} parent=1 // pred_fallthru
      _
    // Predicated region
    $region18: #{_forward_impl.1} parent=1 // pred_check
      _
    $region19: #{_forward_impl.1} parent=1 // pred_check_branch
      %53 = sbr.rel (0) target = $region21
    $region20: #{_forward_impl.1} parent=1 // pred_region
      _
    $region21: #{_forward_impl.1} parent=1 // pred_fallthru
      _
    // Predicated region
    $region22: #{_forward_impl.1} parent=1 // pred_check
      _
    $region23: #{_forward_impl.1} parent=1 // pred_check_branch
      %55 = sbr.rel (0) target = $region25
    $region24: #{_forward_impl.1} parent=1 // pred_region
      %57 = dma.done [#allocation3], 128
    $region25: #{_forward_impl.1} parent=1 // pred_fallthru
      _
    // Predicated region
    $region26: #{_forward_impl.1} parent=1 // pred_check
      _
    $region27: #{_forward_impl.1} parent=1 // pred_check_branch
      %59 = sbr.rel (0) target = $region29
    $region28: #{_forward_impl.1} parent=1 // pred_region
      %61 = dma.done [#allocation6], 256
    $region29: #{_forward_impl.1} parent=1 // pred_fallthru
      _
    // Predicated region
    $region30: #{_forward_impl.1} parent=1 // pred_check
      _
    $region31: #{_forward_impl.1} parent=1 // pred_check_branch
      %63 = sbr.rel (0) target = $region33
    $region32: #{_forward_impl.1} parent=1 // pred_region
      %65 = dma.done [#allocation6], 1024
    $region33: #{_forward_impl.1} parent=1 // pred_fallthru
      _
    %v67 = vld [vmem:[#allocation2] sm:$0xff]
    %v68 = vpack.c.bf16 %v67, %v67
    %v69 = vld [vmem:[#allocation5] sm:$0xf]
    %v70 = vld [vmem:[#allocation5 + $0x4] sm:$0xf]
    %v71 = vld [vmem:[#allocation5 + $0x8] sm:$0xf]
    %v72 = vld [vmem:[#allocation5 + $0xc] sm:$0xf]
    %v77 = vunpack.c.l.b16 %v69
    %v78 = vunpack.c.l.b16 %v70
    %v79 = vunpack.c.l.b16 %v71
    %v80 = vunpack.c.l.b16 %v72
    %v81 = vpack.c.b16 %v78, %v77
    %v82 = vpack.c.b16 %v80, %v79
    %vm85 = vcmask 261120
    %v87 = vsel %vm85, %v68, 0
    %89 = vmatpush.bf16.msra.mxu0 0
    %90 = vmatpush.bf16.msra.mxu0 0
    %91 = vmatpush.bf16.msra.mxu0 0
    %92 = vmatpush.bf16.msra.mxu0 0
    %93 = vmatpush.bf16.msra.mxu0 0
    %94 = vmatpush.bf16.msra.mxu0 0
    %95 = vmatpush.bf16.msra.mxu0 %v82
    %96 = vmatpush.bf16.msra.mxu0 %v81
    %97 = vmatmul.bf16.gmra.mxu0 %v87
    %v98 = vpop.f32.mrf.mxu0
    %v99 = vadd.f32 0.0, %v98
    %v100 = vpop.f32.mrf.mxu0
    %101 = vdwg.mxu0
    %v102 = vpack.c.bf16 %v99, %v99
    %v103 = vld [vmem:[%s2] sm:$0x1]
    %v105 = vpack.i.b16 %v103, %v103
    %v107 = vperm.slane %v105, 0
    %v108 = vunpack.c.l.bf16 %v102
    %v109 = vunpack.c.l.bf16 %v107
    %v110 = vadd.f32 %v108, %v109
    %v111 = vpack.c.bf16 %v110, %v110
    %v112 = vunpack.c.l.bf16 %v111
    %v113 = vmax.f32 %v112, 0.0
    %v114 = vpack.c.bf16 %v113, %v113
    %v115 = vld [vmem:[#allocation7] sm:$0xf]
    %v116 = vld [vmem:[#allocation7 + $0x4] sm:$0xf]
    %v117 = vld [vmem:[#allocation7 + $0x8] sm:$0xf]
    %v118 = vld [vmem:[#allocation7 + $0xc] sm:$0xf]
    %v119 = vld [vmem:[#allocation7 + $0x10] sm:$0xf]
    %v120 = vld [vmem:[#allocation7 + $0x14] sm:$0xf]
    %v121 = vld [vmem:[#allocation7 + $0x18] sm:$0xf]
    %v122 = vld [vmem:[#allocation7 + $0x1c] sm:$0xf]
    %v123 = vld [vmem:[#allocation7 + $0x20] sm:$0xf]
    %v124 = vld [vmem:[#allocation7 + $0x24] sm:$0xf]
    %v125 = vld [vmem:[#allocation7 + $0x28] sm:$0xf]
    %v126 = vld [vmem:[#allocation7 + $0x2c] sm:$0xf]
    %v127 = vld [vmem:[#allocation7 + $0x30] sm:$0xf]
    %v128 = vld [vmem:[#allocation7 + $0x34] sm:$0xf]
    %v129 = vld [vmem:[#allocation7 + $0x38] sm:$0xf]
    %v130 = vld [vmem:[#allocation7 + $0x3c] sm:$0xf]
    %v131 = vld [vmem:[%s4] sm:$0x1]
    %v133 = vperm.slane %v131, 0
    %v151 = vunpack.c.l.b16 %v115
    %v152 = vunpack.c.l.b16 %v116
    %v153 = vunpack.c.l.b16 %v117
    %v154 = vunpack.c.l.b16 %v118
    %v155 = vunpack.c.l.b16 %v119
    %v156 = vunpack.c.l.b16 %v120
    %v157 = vunpack.c.l.b16 %v121
    %v158 = vunpack.c.l.b16 %v122
    %v159 = vunpack.c.l.b16 %v123
    %v160 = vunpack.c.l.b16 %v124
    %v161 = vunpack.c.l.b16 %v125
    %v162 = vunpack.c.l.b16 %v126
    %v163 = vunpack.c.l.b16 %v127
    %v164 = vunpack.c.l.b16 %v128
    %v165 = vunpack.c.l.b16 %v129
    %v166 = vunpack.c.l.b16 %v130
    %v167 = vpack.c.b16 %v152, %v151
    %v168 = vpack.c.b16 %v154, %v153
    %v169 = vpack.c.b16 %v156, %v155
    %v170 = vpack.c.b16 %v158, %v157
    %v171 = vpack.c.b16 %v160, %v159
    %v172 = vpack.c.b16 %v162, %v161
    %v173 = vpack.c.b16 %v164, %v163
    %v174 = vpack.c.b16 %v166, %v165
    %183 = vmatpush.bf16.msra.mxu0 %v174
    %184 = vmatpush.bf16.msra.mxu0 %v173
    %185 = vmatpush.bf16.msra.mxu0 %v172
    %186 = vmatpush.bf16.msra.mxu0 %v171
    %187 = vmatpush.bf16.msra.mxu0 %v170
    %188 = vmatpush.bf16.msra.mxu0 %v169
    %189 = vmatpush.bf16.msra.mxu0 %v168
    %190 = vmatpush.bf16.msra.mxu0 %v167
    %191 = vmatmul.bf16.gmra.mxu0 %v114
    %v192 = vpop.f32.mrf.mxu0
    %v193 = vadd.f32 %v133, %v192
    %v194 = vpop.f32.mrf.mxu0
    %195 = vdwg.mxu0
    %196 = vst [vmem:[#allocation8] sm:$0xff] %v193
    // Predicated region
    $region34: #{_forward_impl.1} parent=1 // pred_check
      _
    $region35: #{_forward_impl.1} parent=1 // pred_check_branch
      %198 = sbr.rel (0) target = $region37
    $region36: #{_forward_impl.1} parent=1 // pred_region
      %200 = vsyncadd [#allocation4], 0
      %s202 = sshll.u32 [#allocation8], 4
      %s203 = int_to_ptr.vmem [resolvable:$true] %s202
      %s204 = sshll.u32 %s5, 4
      %s205 = int_to_ptr.hbm [resolvable:$true] %s204
      %207 = dma.vmem_to_hbm [thread:$0]  %s203, 128, %s205, [#allocation4]
    $region37: #{_forward_impl.1} parent=1 // pred_fallthru
      _
    // Predicated region
    $region38: #{_forward_impl.1} parent=1 // pred_check
      _
    $region39: #{_forward_impl.1} parent=1 // pred_check_branch
      %209 = sbr.rel (0) target = $region41
    $region40: #{_forward_impl.1} parent=1 // pred_region
      %211 = dma.done [#allocation4], 128
    $region41: #{_forward_impl.1} parent=1 // pred_fallthru
      _
    %212 = vsyncpa [#allocation3], 1
    %213 = vsyncpa [#allocation6], 1
    %214 = vsyncpa [#allocation4], 1

</llo_original>
